<compile_context>
chip_gen: v5e
topology: v5e:2x2
jax: 0.10.0
libtpu: 0.0.40
codegen_flags: <defaults>
</compile_context>

<pallas_src>
import functools

import jax
import jax.numpy as jnp
from jax.experimental import pallas as pl
from jax.experimental.pallas import tpu as pltpu


# ----------------------------------------------------------------------------
# Kernels
# ----------------------------------------------------------------------------
def _ipd_kernel_resident(zl_ref, zt_ref, adj_ref, *, tn):
    """One (tm, tn) tile of sigmoid(z @ z.T); zT fully VMEM-resident.

    zl_ref : (tm, D)  row tile of z for this output-row block
    zt_ref : (D, Np)  whole transposed (padded) z, resident in VMEM
    adj_ref: (tm, tn) output tile
    """
    j = pl.program_id(1)
    col0 = pl.multiple_of(j * tn, tn)
    zr = zt_ref[:, pl.ds(col0, tn)]                       # (D, tn) view
    # Fold the 0.5 of sigmoid(x)=0.5*tanh(x/2)+0.5 into the SMALL (tm, D)
    # operand instead of scaling the full (tm, tn) score tile.
    zl_half = zl_ref[...] * 0.5
    s_half = jnp.dot(zl_half, zr, preferred_element_type=jnp.float32)
    adj_ref[...] = (0.5 * jnp.tanh(s_half) + 0.5).astype(adj_ref.dtype)


def _ipd_kernel_tiled(zl_ref, zt_ref, adj_ref):
    """Streamed fallback (zT column tile DMA'd per outer block).

    zl_ref : (tm, D), zt_ref : (D, tn), adj_ref : (tm, tn)
    """
    zl_half = zl_ref[...] * 0.5
    s_half = jnp.dot(zl_half, zt_ref[...], preferred_element_type=jnp.float32)
    adj_ref[...] = (0.5 * jnp.tanh(s_half) + 0.5).astype(adj_ref.dtype)


# ----------------------------------------------------------------------------
# Helpers
# ----------------------------------------------------------------------------
def _vmem_budget_bytes():
    """Generation-aware VMEM budget: physical capacity minus headroom."""
    phys = 64 << 20  # conservative default (v7x has the smallest VMEM)
    try:
        info = pltpu.get_tpu_info()
        phys = int(getattr(info, "vmem_capacity_bytes", phys))
    except Exception:
        pass
    return max(phys - (8 << 20), 32 << 20)


def _pick_tile(n, t_max, align, prefer_even_blocks=False):
    """Largest t dividing n with t <= t_max and t % align == 0.

    With prefer_even_blocks, prefer a t for which n // t is even (v7x megacore);
    fall back to the largest aligned divisor otherwise.
    """
    best = None
    t = (min(t_max, n) // align) * align
    while t >= align:
        if n % t == 0:
            if not prefer_even_blocks or (n // t) % 2 == 0:
                return t
            if best is None:
                best = t
        t -= align
    return best if best is not None else n


def _single_buffered_spec(block_shape, index_map):
    """Buffered(1) spec for a constant-index_map resident operand (the second
    pipeline buffer is never used); plain spec if pipeline_mode is unsupported."""
    try:
        return pl.BlockSpec(block_shape, index_map, pipeline_mode=pl.Buffered(1))
    except TypeError:
        return pl.BlockSpec(block_shape, index_map)


# ----------------------------------------------------------------------------
# Wrapper
# ----------------------------------------------------------------------------
def inner_product_decoder(z, *, dropout=0.0, training=False, key=None,
                          tm_max=512, tn_max=2048, out_dtype=jnp.bfloat16,
                          force_streamed=False):
    """Pallas implementation of InnerProductDecoder.forward.

    z: (N, D) float array. Returns (N, N) = sigmoid(dropout(z) @ dropout(z).T).
    bf16 output is the default fast path (writeback-bound kernel); pass
    out_dtype=jnp.float32 for exact parity with the PyTorch module.
    """
    if training and dropout > 0.0:
        # Inverted dropout, matches F.dropout semantics (elementwise glue).
        # TODO(synk): fuse via pltpu.prng_random_bits (must reuse the identical
        # per-node mask for the row and column operands).
        assert key is not None
        keep = jax.random.bernoulli(key, p=1.0 - dropout, shape=z.shape)
        z = jnp.where(keep, z / (1.0 - dropout), 0.0).astype(z.dtype)

    N, D = z.shape

    # Pad N to a multiple of 128: guarantees lane-dense, unmasked output stores
    # and avoids awkward (tm, N) fallback tiles for non-aligned N.
    Np = ((N + 127) // 128) * 128
    zp = z if Np == N else jnp.pad(z, ((0, Np - N), (0, 0)))

    budget = _vmem_budget_bytes()
    z_bytes = jnp.dtype(zp.dtype).itemsize
    out_bytes = jnp.dtype(out_dtype).itemsize

    # Lane-dense output tiles (multiples of 128 on both axes).
    tn = _pick_tile(Np, tn_max, 128)
    tm = _pick_tile(Np, tm_max, 128)
    # v7x megacore: keep the total number of parallel blocks even when possible.
    if ((Np // tm) * (Np // tn)) % 2 != 0:
        tm_even = _pick_tile(Np, tm, 128, prefer_even_blocks=True)
        if (Np // tm_even) % 2 == 0:
            tm = tm_even

    def _fixed_vmem(tm_, tn_):
        # zl double buffer + output double buffer + margin.
        return 2 * tm_ * D * z_bytes + 2 * tm_ * tn_ * out_bytes + (2 << 20)

    # Shrink the output tile if needed (leave at least half the budget for zT).
    while _fixed_vmem(tm, tn) > budget // 2:
        if tn >= tm and tn > 128:
            tn = _pick_tile(Np, max(tn // 2, 128), 128)
        elif tm > 128:
            tm = _pick_tile(Np, max(tm // 2, 128), 128)
        else:
            break

    fixed = _fixed_vmem(tm, tn)
    zt_1buf = D * Np * z_bytes

    # Pre-transpose once in the wrapper (N*D is tiny) -> standard (M,K)x(K,N)
    # contraction in the kernel, no per-tile XLU transpose.
    zt = zp.T  # (D, Np)

    if not force_streamed and 2 * zt_1buf + fixed <= budget:
        resident = True
        zt_spec = pl.BlockSpec((D, Np), lambda i, j: (0, 0))  # resident, DMA'd once
    elif not force_streamed and zt_1buf + fixed <= budget:
        resident = True
        zt_spec = _single_buffered_spec((D, Np), lambda i, j: (0, 0))
    else:
        resident = False

    if resident:
        kernel = functools.partial(_ipd_kernel_resident, tn=tn)
        grid = (Np // tm, Np // tn)
        in_specs = [pl.BlockSpec((tm, D), lambda i, j: (i, 0)), zt_spec]
        out_spec = pl.BlockSpec((tm, tn), lambda i, j: (i, j))
    else:
        kernel = _ipd_kernel_tiled
        # Row axis innermost: the streamed zT column tile (D, tn) stays constant
        # across the inner sweep; only the small (tm, D) row tile re-streams.
        grid = (Np // tn, Np // tm)
        in_specs = [pl.BlockSpec((tm, D), lambda j, i: (i, 0)),
                    pl.BlockSpec((D, tn), lambda j, i: (0, j))]
        out_spec = pl.BlockSpec((tm, tn), lambda j, i: (i, j))

    adj = pl.pallas_call(
        kernel,
        out_shape=jax.ShapeDtypeStruct((Np, Np), out_dtype),
        grid_spec=pltpu.PrefetchScalarGridSpec(
            num_scalar_prefetch=0,
            grid=grid,
            in_specs=in_specs,
            out_specs=out_spec,
        ),
        compiler_params=pltpu.CompilerParams(
            dimension_semantics=("parallel", "parallel"),
            vmem_limit_bytes=int(budget),
        ),
    )(zp, zt)

    return adj if Np == N else adj[:N, :N]


def inner_product_decoder_ref(z, *, dropout=0.0, training=False, key=None):
    """Pure-JAX reference for correctness checking."""
    if training and dropout > 0.0:
        keep = jax.random.bernoulli(key, p=1.0 - dropout, shape=z.shape)
        z = jnp.where(keep, z / (1.0 - dropout), 0.0).astype(z.dtype)
    return jax.nn.sigmoid(z @ z.T)


if __name__ == "__main__":
    # Module __init__ has no learned parameters (only dropout rate + act);
    # nothing to initialize beyond the input latent codes z.
    key = jax.random.PRNGKey(0)
    N, D = 256, 32  # 256 nodes, 32-dim latent embeddings
    z = jax.random.normal(key, (N, D), dtype=jnp.float32)

    adj_ref = inner_product_decoder_ref(z, dropout=0.1, training=False)

    # Fast path: bf16 adjacency (default), resident zT. Eval-mode forward
    # (dropout is identity), matching typical inference use.
    adj_bf16 = jax.block_until_ready(
        inner_product_decoder(z, dropout=0.1, training=False))
    assert adj_bf16.shape == (N, N) and adj_bf16.dtype == jnp.bfloat16
    assert jnp.max(jnp.abs(adj_bf16.astype(jnp.float32) - adj_ref)) < 5e-3

    # Exact-parity path: f32 adjacency (tanh-form sigmoid + MXU accumulation
    # differ from the reference by a few ULPs at most).
    adj_f32 = jax.block_until_ready(
        inner_product_decoder(z, dropout=0.1, training=False,
                              out_dtype=jnp.float32))
    assert adj_f32.dtype == jnp.float32
    assert jnp.max(jnp.abs(adj_f32 - adj_ref)) < 1e-4

    # Streamed fallback (forced): exercises the row-innermost grid order.
    adj_str = jax.block_until_ready(
        inner_product_decoder(z, out_dtype=jnp.float32, force_streamed=True))
    assert jnp.max(jnp.abs(adj_str - adj_ref)) < 1e-4

    # Non-128-multiple N: exercises the padding path (lane-dense stores kept).
    z2 = jax.random.normal(jax.random.PRNGKey(1), (200, 16), dtype=jnp.float32)
    adj2 = jax.block_until_ready(inner_product_decoder(z2, out_dtype=jnp.float32))
    assert adj2.shape == (200, 200)
    assert jnp.max(jnp.abs(adj2 - inner_product_decoder_ref(z2))) < 1e-4

    print("KERNEL_OK")
</pallas_src>

<mosaic_0001>
module attributes {stable_mosaic.version = 11 : i64} {
  func.func @_ipd_kernel_resident(%arg0: i32, %arg1: i32, %arg2: memref<128x32xf32, #tpu.memory_space<vmem>>, %arg3: memref<32x256xf32, #tpu.memory_space<vmem>>, %arg4: memref<128x256xbf16, #tpu.memory_space<vmem>>) attributes {dimension_semantics = [#tpu.dimension_semantics<parallel>, #tpu.dimension_semantics<parallel>], iteration_bounds = array<i64: 2, 1>, scalar_prefetch = 0 : i64, scratch_operands = 0 : i64, tpu.core_type = #tpu.core_type<tc>, window_params = [{transform_indices = @transform_0, window_bounds = array<i64: 128, 32>}, {pipeline_mode = #tpu.pipeline_mode<synchronous>, transform_indices = @transform_1, window_bounds = array<i64: 32, 256>}, {transform_indices = @transform_2, window_bounds = array<i64: 128, 256>}]} {
    %c256_i32 = arith.constant 256 : i32
    %0 = arith.muli %arg1, %c256_i32 : i32
    %1 = tpu.assume_multiple %0, 256 : i32
    %c0 = arith.constant 0 : index
    %2 = arith.index_cast %1 : i32 to index
    %3 = vector.load %arg3[%c0, %2] : memref<32x256xf32, #tpu.memory_space<vmem>>, vector<32x256xf32>
    %c0_0 = arith.constant 0 : index
    %c0_1 = arith.constant 0 : index
    %4 = vector.load %arg2[%c0_0, %c0_1] : memref<128x32xf32, #tpu.memory_space<vmem>>, vector<128x32xf32>
    %cst = arith.constant 5.000000e-01 : f32
    %5 = vector.broadcast %cst : f32 to vector<128x32xf32>
    %6 = arith.mulf %4, %5 : vector<128x32xf32>
    %cst_2 = arith.constant dense<0.000000e+00> : vector<128x256xf32>
    %7 = tpu.matmul %6, %3, %cst_2 {dimension_numbers = #tpu.dot_dimension_numbers<[1], [0], [0], [1], [0, 0, 1, 1], [], []>} : vector<128x32xf32>, vector<32x256xf32>, vector<128x256xf32> -> vector<128x256xf32>
    %8 = math.tanh %7 : vector<128x256xf32>
    %cst_3 = arith.constant 5.000000e-01 : f32
    %9 = vector.broadcast %cst_3 : f32 to vector<128x256xf32>
    %10 = arith.mulf %9, %8 : vector<128x256xf32>
    %cst_4 = arith.constant 5.000000e-01 : f32
    %11 = vector.broadcast %cst_4 : f32 to vector<128x256xf32>
    %12 = arith.addf %10, %11 : vector<128x256xf32>
    %13 = arith.truncf %12 : vector<128x256xf32> to vector<128x256xbf16>
    %c0_5 = arith.constant 0 : index
    %c0_6 = arith.constant 0 : index
    %14 = vector.load %arg4[%c0_5, %c0_6] : memref<128x256xbf16, #tpu.memory_space<vmem>>, vector<128x256xbf16>
    tpu.vector_store %arg4[%c0_5, %c0_6], %13 {strides = array<i32>} : memref<128x256xbf16, #tpu.memory_space<vmem>>, vector<128x256xbf16>,
    return
  }
  func.func @transform_0(%arg0: i32, %arg1: i32) -> (i32, i32) {
    %c0_i32 = arith.constant 0 : i32
    %c0_i32_0 = arith.constant 0 : i32
    return %arg0, %c0_i32 : i32, i32
  }
  func.func @transform_1(%arg0: i32, %arg1: i32) -> (i32, i32) {
    %c0_i32 = arith.constant 0 : i32
    %c0_i32_0 = arith.constant 0 : i32
    %c0_i32_1 = arith.constant 0 : i32
    return %c0_i32, %c0_i32_0 : i32, i32
  }
  func.func @transform_2(%arg0: i32, %arg1: i32) -> (i32, i32) {
    %c0_i32 = arith.constant 0 : i32
    return %arg0, %arg1 : i32, i32
  }
}

</mosaic_0001>

<llo_original>
// kernel: tpu_custom_call.1
$region0: #{tpu_custom_call.1}
  #allocation0 [shape = 'u32[]', space=smem, size = 0x4, offset = 0x4, fixed_abs, tag = 'smem constant byte address 0x4 - core index']
  #allocation1 [shape = 'u32[72,128]{1,0:T(1,128)}', space=vmem, size = 0x9000, scoped, tag = 'internal scratch']
  %s0 = inlined_call_operand.vmem [shape: f32[256,32], index: 0, kind: input, shape index: {}]
  %s1 = inlined_call_operand.vmem [shape: f32[32,256], index: 1, kind: input, shape index: {}]
  %s2 = inlined_call_operand.hbm [shape: bf16[256,256], index: 2, kind: output, shape index: {}]
  %s3 = sld [smem:[#allocation0]]
  $region41: #{tpu_custom_call.1} parent=0
    _
  %s5 = ssub.s32 1, %s3
  %s6 = scalar_select 0, %s5, %s3
  $region1: #{tpu_custom_call.1} parent=0
    #allocation2 [shape = 'u8[131072]{0}', space=vmem, size = 0x20000, scoped, tag = 'output window, operand 0']
    #allocation3 [shape = 's32[2]{0}', space=sflag, size = 0x8, scoped, tag = 'scoped memory for tpu_custom_call.1']
    %7 = vsyncpa [#allocation3], 0
    %s8 = scalar_lea.sflag [#allocation3], 1
    %9 = vsyncpa %s8, 0
    loop: start=0, step=1, limit=4
    $region2: #{tpu_custom_call.1} parent=1 // loop_pre_header
      _
    $region3: #{tpu_custom_call.1} parent=1 // loop_header
      %s11 = sphi 0, %s15
      %p12 = scmp.ge.s32.totalorder %s11, 4
      %s18 = sphi 0, %s30
      %s19 = sphi 0, %s26
      %s20 = sphi 0, %s18
      %s21 = sphi 0, %s19
      %s22 = sphi 0, %s20
      %s23 = sphi 0, %s21
      %s33 = sphi 0, %s35
      %s36 = sphi 0, %s33
      %s37 = sphi 0, %s36
      %s53 = sphi 0, %s37
      %s57 = sphi 0, %s57
      %s59 = sphi 0, %s57
      %s60 = sphi 0, %s59
      %s74 = sphi 0, %s60
      %s82 = sphi 0, %s84
      %s85 = sphi 0, %s82
      %s86 = sphi 0, %s85
      %s102 = sphi 0, %s86
    $region4: #{tpu_custom_call.1} parent=1 // loop_header_branch
      %14 = sbr.rel (%p12) target = $region8
    $region5: #{tpu_custom_call.1} parent=1 // loop_body
      %s16 = ssub.s32 %s11, 1
      %s17 = ssub.s32 %s11, 2
      %s24 = sadd.s32 1, %s19
      %p25 = scmp.ge.s32.totalorder %s24, 1
      %s26 = scalar_select %p25, 0, %s24
      %s27 = sadd.s32 1, %s18
      %s28 = scalar_select %p25, %s27, %s18
      %p29 = scmp.ge.s32.totalorder %s28, 2
      %s30 = scalar_select %p29, 0, %s28
      %s31 = ssub.s32 %s18, %s30
      %p32 = scmp.eq.s32.totalorder %s31, 0
      %s34 = sadd.s32 %s33, 1
      %s35 = scalar_select %p32, %s33, %s34
      %p38 = pneg %p32
      %p39 = scmp.eq.s32.totalorder %s11, 1
      %p40 = por %p38, %p39
      %p41 = scmp.ne.s32.totalorder %s33, %s36
      %p42 = scmp.eq.s32.totalorder %s11, 0
      %p43 = por %p41, %p42
      %p44 = scmp.ne.s32.totalorder %s33, %s36
      %p45 = scmp.eq.s32.totalorder %s16, 1
      %p46 = por %p44, %p45
      %p47 = scmp.ne.s32.totalorder %s36, %s37
      %p48 = scmp.eq.s32.totalorder %s16, 0
      %p49 = por %p47, %p48
      %p50 = scmp.ne.s32.totalorder %s36, %s37
      %p51 = scmp.eq.s32.totalorder %s17, 1
      %p52 = por %p50, %p51
      %p54 = scmp.ne.s32.totalorder %s37, %s53
      %p55 = scmp.eq.s32.totalorder %s17, 0
      %p56 = por %p54, %p55
      %s58 = sadd.s32 %s57, 1
      %p61 = scmp.eq.s32.totalorder %s11, 1
      %p62 = scmp.ne.s32.totalorder %s57, %s59
      %p63 = scmp.eq.s32.totalorder %s11, 0
      %p64 = por %p62, %p63
      %p65 = scmp.ne.s32.totalorder %s57, %s59
      %p66 = scmp.eq.s32.totalorder %s16, 1
      %p67 = por %p65, %p66
      %p68 = scmp.ne.s32.totalorder %s59, %s60
      %p69 = scmp.eq.s32.totalorder %s16, 0
      %p70 = por %p68, %p69
      %p71 = scmp.ne.s32.totalorder %s59, %s60
      %p72 = scmp.eq.s32.totalorder %s17, 1
      %p73 = por %p71, %p72
      %p75 = scmp.ne.s32.totalorder %s60, %s74
      %p76 = scmp.eq.s32.totalorder %s17, 0
      %p77 = por %p75, %p76
      %s78 = ssub.s32 %s18, %s30
      %s79 = ssub.s32 %s19, %s26
      %s80 = sor.u32 %s78, %s79
      %p81 = scmp.eq.s32.totalorder %s80, 0
      %s83 = sadd.s32 %s82, 1
      %s84 = scalar_select %p81, %s82, %s83
      %p87 = pneg %p81
      %p88 = scmp.eq.s32.totalorder %s11, 1
      %p89 = por %p87, %p88
      %p90 = scmp.ne.s32.totalorder %s82, %s85
      %p91 = scmp.eq.s32.totalorder %s11, 0
      %p92 = por %p90, %p91
      %p93 = scmp.ne.s32.totalorder %s82, %s85
      %p94 = scmp.eq.s32.totalorder %s16, 1
      %p95 = por %p93, %p94
      %p96 = scmp.ne.s32.totalorder %s85, %s86
      %p97 = scmp.eq.s32.totalorder %s16, 0
      %p98 = por %p96, %p97
      %p99 = scmp.ne.s32.totalorder %s85, %s86
      %p100 = scmp.eq.s32.totalorder %s17, 1
      %p101 = por %p99, %p100
      %p103 = scmp.ne.s32.totalorder %s86, %s102
      %p104 = scmp.eq.s32.totalorder %s17, 0
      %p105 = por %p103, %p104
      %p106 = scmp.le.s32.totalorder 1, %s11
      %p107 = scmp.lt.s32.totalorder %s11, 3
      %p108 = pnand %p106, %p107
      %p109 = pneg %p108
      // Predicated region
      $region9: #{tpu_custom_call.1} parent=5 // pred_check
        _
      $region10: #{tpu_custom_call.1} parent=5 // pred_check_branch
        %111 = sbr.rel (%p108) target = $region12
      $region11: #{tpu_custom_call.1} parent=5 // pred_region
        %s112 = ssub.s32 %s11, 1
        // Predicated region
        $region13: #{tpu_custom_call.1} parent=11 // pred_check
          %p113 = pneg %p70
        $region14: #{tpu_custom_call.1} parent=11 // pred_check_branch
          %115 = sbr.rel (%p113) target = $region16
        $region15: #{tpu_custom_call.1} parent=11 // pred_region
          _
        $region16: #{tpu_custom_call.1} parent=11 // pred_fallthru
          _
      $region12: #{tpu_custom_call.1} parent=5 // pred_fallthru
        _
      %p116 = scmp.lt.s32.totalorder %s11, 2
      // Predicated region
      $region17: #{tpu_custom_call.1} parent=5 // pred_check
        %p117 = pneg %p116
      $region18: #{tpu_custom_call.1} parent=5 // pred_check_branch
        %119 = sbr.rel (%p117) target = $region20
      $region19: #{tpu_custom_call.1} parent=5 // pred_region
        // Predicated region
        $region21: #{tpu_custom_call.1} parent=19 // pred_check
          %p120 = pneg %p43
        $region22: #{tpu_custom_call.1} parent=19 // pred_check_branch
          %122 = sbr.rel (%p120) target = $region24
        $region23: #{tpu_custom_call.1} parent=19 // pred_region
          %s123 = smul.u32 16, %s18
          %p124 = scmp.lt.s32.totalorder %s123, 31
          %s125 = scalar_select %p124, %s123, 31
          %s126 = smul.addr %s125, 8
          %s127 = scalar_lea.vmem %s0, %s126
          %s128 = smul.u32 16, %s18
        $region24: #{tpu_custom_call.1} parent=19 // pred_fallthru
          _
      $region20: #{tpu_custom_call.1} parent=5 // pred_fallthru
        _
      %p129 = scmp.le.s32.totalorder 1, %s11
      %p130 = scmp.lt.s32.totalorder %s11, 3
      %p131 = pnand %p129, %p130
      %p132 = pneg %p131
      // Predicated region
      $region25: #{tpu_custom_call.1} parent=5 // pred_check
        _
      $region26: #{tpu_custom_call.1} parent=5 // pred_check_branch
        %134 = sbr.rel (%p131) target = $region28
      $region27: #{tpu_custom_call.1} parent=5 // pred_region
        %s135 = ssub.s32 %s11, 1
        %s136 = smul.u32 16, %s20
        %p137 = scmp.lt.s32.totalorder %s136, 31
        %s138 = scalar_select %p137, %s136, 31
        %s139 = smul.addr %s138, 8
        %s140 = scalar_lea.vmem %s0, %s139
        %p141 = pneg %p49
        %p142 = pneg %p46
        %p143 = pneg %p70
        %p144 = pneg %p67
        %p145 = pneg %p98
        %p146 = pneg %p95
        %s147 = sand.u32 %s85, 1
        %s148 = scalar_lea.sflag [#allocation3], %s147
        %s149 = sand.u32 %s85, 1
        %s150 = smul.addr %s149, 128
        %s151 = scalar_lea.vmem [#allocation2], %s150
        %s152 = smul.u32 16, %s20
        %p153 = scmp.lt.s32.totalorder %s152, 31
        %s154 = scalar_select %p153, %s152, 31
        %s155 = smul.addr %s154, 8
        %s156 = scalar_lea.vmem %s0, %s155
        %s157 = smul.u32 16, %s20
        %s158 = smul.u32 16, %s20
        %s159 = smul.u32 2, %s21
        %s160 = smul.u32 %s21, 256
        %s161 = sshra.s32 %s160, 7
        %s162 = sand.u32 %s160, 127
        %s163 = smul.addr %s161, 8
        %s164 = scalar_lea.vmem %s1, %s163
        %v165 = vld [vmem:[%s164] sm:$0xff]
        %v166 = vld [vmem:[%s164 + $0x8] sm:$0xff]
        %v167 = vld [vmem:[%s164 + $0x10] sm:$0xff]
        %v168 = vld [vmem:[%s164 + $0x18] sm:$0xff]
        %v169 = vld [vmem:[%s164 + $0x20] sm:$0xff]
        %v170 = vld [vmem:[%s164 + $0x28] sm:$0xff]
        %v171 = vld [vmem:[%s164 + $0x30] sm:$0xff]
        %v172 = vld [vmem:[%s164 + $0x38] sm:$0xff]
        %v173 = vld [vmem:[%s156] sm:$0xff]
        %v174 = vld [vmem:[%s156 + $0x8] sm:$0xff]
        %v175 = vld [vmem:[%s156 + $0x10] sm:$0xff]
        %v176 = vld [vmem:[%s156 + $0x18] sm:$0xff]
        %v177 = vld [vmem:[%s156 + $0x20] sm:$0xff]
        %v178 = vld [vmem:[%s156 + $0x28] sm:$0xff]
        %v179 = vld [vmem:[%s156 + $0x30] sm:$0xff]
        %v180 = vld [vmem:[%s156 + $0x38] sm:$0xff]
        %v181 = vld [vmem:[%s156 + $0x40] sm:$0xff]
        %v182 = vld [vmem:[%s156 + $0x48] sm:$0xff]
        %v183 = vld [vmem:[%s156 + $0x50] sm:$0xff]
        %v184 = vld [vmem:[%s156 + $0x58] sm:$0xff]
        %v185 = vld [vmem:[%s156 + $0x60] sm:$0xff]
        %v186 = vld [vmem:[%s156 + $0x68] sm:$0xff]
        %v187 = vld [vmem:[%s156 + $0x70] sm:$0xff]
        %v188 = vld [vmem:[%s156 + $0x78] sm:$0xff]
        %v189 = vmul.f32 %v173, 0.5
        %v190 = vmul.f32 %v174, 0.5
        %v191 = vmul.f32 %v175, 0.5
        %v192 = vmul.f32 %v176, 0.5
        %v193 = vmul.f32 %v177, 0.5
        %v194 = vmul.f32 %v178, 0.5
        %v195 = vmul.f32 %v179, 0.5
        %v196 = vmul.f32 %v180, 0.5
        %v197 = vmul.f32 %v181, 0.5
        %v198 = vmul.f32 %v182, 0.5
        %v199 = vmul.f32 %v183, 0.5
        %v200 = vmul.f32 %v184, 0.5
        %v201 = vmul.f32 %v185, 0.5
        %v202 = vmul.f32 %v186, 0.5
        %v203 = vmul.f32 %v187, 0.5
        %v204 = vmul.f32 %v188, 0.5
        %vm205 = vcmask 261120
        %v207 = vsel %vm205, %v189, 0
        %v210 = vsel %vm205, %v190, 0
        %v213 = vsel %vm205, %v191, 0
        %v216 = vsel %vm205, %v192, 0
        %v219 = vsel %vm205, %v193, 0
        %v222 = vsel %vm205, %v194, 0
        %v225 = vsel %vm205, %v195, 0
        %v228 = vsel %vm205, %v196, 0
        %v231 = vsel %vm205, %v197, 0
        %v234 = vsel %vm205, %v198, 0
        %v237 = vsel %vm205, %v199, 0
        %v240 = vsel %vm205, %v200, 0
        %v243 = vsel %vm205, %v201, 0
        %v246 = vsel %vm205, %v202, 0
        %v249 = vsel %vm205, %v203, 0
        %v252 = vsel %vm205, %v204, 0
        %254 = vmatpush.msra.mxu0 0.0
        %255 = vmatpush.msra.mxu0 0.0
        %256 = vmatpush.msra.mxu0 0.0
        %257 = vmatpush.msra.mxu0 0.0
        %258 = vmatpush.msra.mxu0 0.0
        %259 = vmatpush.msra.mxu0 0.0
        %260 = vmatpush.msra.mxu0 0.0
        %261 = vmatpush.msra.mxu0 0.0
        %262 = vmatpush.msra.mxu0 0.0
        %263 = vmatpush.msra.mxu0 0.0
        %264 = vmatpush.msra.mxu0 0.0
        %265 = vmatpush.msra.mxu0 0.0
        %266 = vmatpush.msra.mxu0 %v171
        %267 = vmatpush.msra.mxu0 %v169
        %268 = vmatpush.msra.mxu0 %v167
        %269 = vmatpush.msra.mxu0 %v165
        %270 = vmatmul.f32.gmra.mxu0 %v207
        %v271 = vpop.f32.mrf.mxu0
        %v272 = vadd.f32 0.0, %v271
        %273 = vmatmul.f32.gmra.mxu0 %v210
        %v274 = vpop.f32.mrf.mxu0
        %v275 = vadd.f32 0.0, %v274
        %276 = vmatmul.f32.gmra.mxu0 %v213
        %v277 = vpop.f32.mrf.mxu0
        %v278 = vadd.f32 0.0, %v277
        %279 = vmatmul.f32.gmra.mxu0 %v216
        %v280 = vpop.f32.mrf.mxu0
        %v281 = vadd.f32 0.0, %v280
        %282 = vmatmul.f32.gmra.mxu0 %v219
        %v283 = vpop.f32.mrf.mxu0
        %v284 = vadd.f32 0.0, %v283
        %285 = vmatmul.f32.gmra.mxu0 %v222
        %v286 = vpop.f32.mrf.mxu0
        %v287 = vadd.f32 0.0, %v286
        %288 = vmatmul.f32.gmra.mxu0 %v225
        %v289 = vpop.f32.mrf.mxu0
        %v290 = vadd.f32 0.0, %v289
        %291 = vmatmul.f32.gmra.mxu0 %v228
        %v292 = vpop.f32.mrf.mxu0
        %v293 = vadd.f32 0.0, %v292
        %294 = vmatmul.f32.gmra.mxu0 %v231
        %v295 = vpop.f32.mrf.mxu0
        %v296 = vadd.f32 0.0, %v295
        %297 = vmatmul.f32.gmra.mxu0 %v234
        %v298 = vpop.f32.mrf.mxu0
        %v299 = vadd.f32 0.0, %v298
        %300 = vmatmul.f32.gmra.mxu0 %v237
        %v301 = vpop.f32.mrf.mxu0
        %v302 = vadd.f32 0.0, %v301
        %303 = vmatmul.f32.gmra.mxu0 %v240
        %v304 = vpop.f32.mrf.mxu0
        %v305 = vadd.f32 0.0, %v304
        %306 = vmatmul.f32.gmra.mxu0 %v243
        %v307 = vpop.f32.mrf.mxu0
        %v308 = vadd.f32 0.0, %v307
        %309 = vmatmul.f32.gmra.mxu0 %v246
        %v310 = vpop.f32.mrf.mxu0
        %v311 = vadd.f32 0.0, %v310
        %312 = vmatmul.f32.gmra.mxu0 %v249
        %v313 = vpop.f32.mrf.mxu0
        %v314 = vadd.f32 0.0, %v313
        %315 = vmatmul.f32.gmra.mxu0 %v252
        %v316 = vpop.f32.mrf.mxu0
        %v317 = vadd.f32 0.0, %v316
        %318 = vdwg.mxu0
        %319 = vmatpush.msra.mxu0 0.0
        %320 = vmatpush.msra.mxu0 0.0
        %321 = vmatpush.msra.mxu0 0.0
        %322 = vmatpush.msra.mxu0 0.0
        %323 = vmatpush.msra.mxu0 0.0
        %324 = vmatpush.msra.mxu0 0.0
        %325 = vmatpush.msra.mxu0 0.0
        %326 = vmatpush.msra.mxu0 0.0
        %327 = vmatpush.msra.mxu0 0.0
        %328 = vmatpush.msra.mxu0 0.0
        %329 = vmatpush.msra.mxu0 0.0
        %330 = vmatpush.msra.mxu0 0.0
        %331 = vmatpush.msra.mxu0 %v172
        %332 = vmatpush.msra.mxu0 %v170
        %333 = vmatpush.msra.mxu0 %v168
        %334 = vmatpush.msra.mxu0 %v166
        %335 = vmatmul.f32.gmra.mxu0 %v207
        %v336 = vpop.f32.mrf.mxu0
        %v337 = vadd.f32 0.0, %v336
        %338 = vmatmul.f32.gmra.mxu0 %v210
        %v339 = vpop.f32.mrf.mxu0
        %v340 = vadd.f32 0.0, %v339
        %341 = vmatmul.f32.gmra.mxu0 %v213
        %v342 = vpop.f32.mrf.mxu0
        %v343 = vadd.f32 0.0, %v342
        %344 = vmatmul.f32.gmra.mxu0 %v216
        %v345 = vpop.f32.mrf.mxu0
        %v346 = vadd.f32 0.0, %v345
        %347 = vmatmul.f32.gmra.mxu0 %v219
        %v348 = vpop.f32.mrf.mxu0
        %v349 = vadd.f32 0.0, %v348
        %350 = vmatmul.f32.gmra.mxu0 %v222
        %v351 = vpop.f32.mrf.mxu0
        %v352 = vadd.f32 0.0, %v351
        %353 = vmatmul.f32.gmra.mxu0 %v225
        %v354 = vpop.f32.mrf.mxu0
        %v355 = vadd.f32 0.0, %v354
        %356 = vmatmul.f32.gmra.mxu0 %v228
        %v357 = vpop.f32.mrf.mxu0
        %v358 = vadd.f32 0.0, %v357
        %359 = vmatmul.f32.gmra.mxu0 %v231
        %v360 = vpop.f32.mrf.mxu0
        %v361 = vadd.f32 0.0, %v360
        %362 = vmatmul.f32.gmra.mxu0 %v234
        %v363 = vpop.f32.mrf.mxu0
        %v364 = vadd.f32 0.0, %v363
        %365 = vmatmul.f32.gmra.mxu0 %v237
        %v366 = vpop.f32.mrf.mxu0
        %v367 = vadd.f32 0.0, %v366
        %368 = vmatmul.f32.gmra.mxu0 %v240
        %v369 = vpop.f32.mrf.mxu0
        %v370 = vadd.f32 0.0, %v369
        %371 = vmatmul.f32.gmra.mxu0 %v243
        %v372 = vpop.f32.mrf.mxu0
        %v373 = vadd.f32 0.0, %v372
        %374 = vmatmul.f32.gmra.mxu0 %v246
        %v375 = vpop.f32.mrf.mxu0
        %v376 = vadd.f32 0.0, %v375
        %377 = vmatmul.f32.gmra.mxu0 %v249
        %v378 = vpop.f32.mrf.mxu0
        %v379 = vadd.f32 0.0, %v378
        %380 = vmatmul.f32.gmra.mxu0 %v252
        %v381 = vpop.f32.mrf.mxu0
        %v382 = vadd.f32 0.0, %v381
        %383 = vdwg.mxu0
        %v384 = vtanh.pop %v272
        %v385 = vtanh.pop %v337
        %v386 = vtanh.pop %v275
        %v387 = vtanh.pop %v340
        %v388 = vtanh.pop %v278
        %v389 = vtanh.pop %v343
        %v390 = vtanh.pop %v281
        %v391 = vtanh.pop %v346
        %v392 = vtanh.pop %v284
        %v393 = vtanh.pop %v349
        %v394 = vtanh.pop %v287
        %v395 = vtanh.pop %v352
        %v396 = vtanh.pop %v290
        %v397 = vtanh.pop %v355
        %v398 = vtanh.pop %v293
        %v399 = vtanh.pop %v358
        %v400 = vtanh.pop %v296
        %v401 = vtanh.pop %v361
        %v402 = vtanh.pop %v299
        %v403 = vtanh.pop %v364
        %v404 = vtanh.pop %v302
        %v405 = vtanh.pop %v367
        %v406 = vtanh.pop %v305
        %v407 = vtanh.pop %v370
        %v408 = vtanh.pop %v308
        %v409 = vtanh.pop %v373
        %v410 = vtanh.pop %v311
        %v411 = vtanh.pop %v376
        %v412 = vtanh.pop %v314
        %v413 = vtanh.pop %v379
        %v414 = vtanh.pop %v317
        %v415 = vtanh.pop %v382
        %v416 = vmul.f32 %v384, 0.5
        %v417 = vmul.f32 %v385, 0.5
        %v418 = vmul.f32 %v386, 0.5
        %v419 = vmul.f32 %v387, 0.5
        %v420 = vmul.f32 %v388, 0.5
        %v421 = vmul.f32 %v389, 0.5
        %v422 = vmul.f32 %v390, 0.5
        %v423 = vmul.f32 %v391, 0.5
        %v424 = vmul.f32 %v392, 0.5
        %v425 = vmul.f32 %v393, 0.5
        %v426 = vmul.f32 %v394, 0.5
        %v427 = vmul.f32 %v395, 0.5
        %v428 = vmul.f32 %v396, 0.5
        %v429 = vmul.f32 %v397, 0.5
        %v430 = vmul.f32 %v398, 0.5
        %v431 = vmul.f32 %v399, 0.5
        %v432 = vmul.f32 %v400, 0.5
        %v433 = vmul.f32 %v401, 0.5
        %v434 = vmul.f32 %v402, 0.5
        %v435 = vmul.f32 %v403, 0.5
        %v436 = vmul.f32 %v404, 0.5
        %v437 = vmul.f32 %v405, 0.5
        %v438 = vmul.f32 %v406, 0.5
        %v439 = vmul.f32 %v407, 0.5
        %v440 = vmul.f32 %v408, 0.5
        %v441 = vmul.f32 %v409, 0.5
        %v442 = vmul.f32 %v410, 0.5
        %v443 = vmul.f32 %v411, 0.5
        %v444 = vmul.f32 %v412, 0.5
        %v445 = vmul.f32 %v413, 0.5
        %v446 = vmul.f32 %v414, 0.5
        %v447 = vmul.f32 %v415, 0.5
        %v448 = vadd.f32 %v416, 0.5
        %v449 = vadd.f32 %v417, 0.5
        %v450 = vadd.f32 %v418, 0.5
        %v451 = vadd.f32 %v419, 0.5
        %v452 = vadd.f32 %v420, 0.5
        %v453 = vadd.f32 %v421, 0.5
        %v454 = vadd.f32 %v422, 0.5
        %v455 = vadd.f32 %v423, 0.5
        %v456 = vadd.f32 %v424, 0.5
        %v457 = vadd.f32 %v425, 0.5
        %v458 = vadd.f32 %v426, 0.5
        %v459 = vadd.f32 %v427, 0.5
        %v460 = vadd.f32 %v428, 0.5
        %v461 = vadd.f32 %v429, 0.5
        %v462 = vadd.f32 %v430, 0.5
        %v463 = vadd.f32 %v431, 0.5
        %v464 = vadd.f32 %v432, 0.5
        %v465 = vadd.f32 %v433, 0.5
        %v466 = vadd.f32 %v434, 0.5
        %v467 = vadd.f32 %v435, 0.5
        %v468 = vadd.f32 %v436, 0.5
        %v469 = vadd.f32 %v437, 0.5
        %v470 = vadd.f32 %v438, 0.5
        %v471 = vadd.f32 %v439, 0.5
        %v472 = vadd.f32 %v440, 0.5
        %v473 = vadd.f32 %v441, 0.5
        %v474 = vadd.f32 %v442, 0.5
        %v475 = vadd.f32 %v443, 0.5
        %v476 = vadd.f32 %v444, 0.5
        %v477 = vadd.f32 %v445, 0.5
        %v478 = vadd.f32 %v446, 0.5
        %v479 = vadd.f32 %v447, 0.5
        %v480 = vpack.c.bf16 %v449, %v448
        %v481 = vpack.c.bf16 %v451, %v450
        %v482 = vpack.c.bf16 %v453, %v452
        %v483 = vpack.c.bf16 %v455, %v454
        %v484 = vpack.c.bf16 %v457, %v456
        %v485 = vpack.c.bf16 %v459, %v458
        %v486 = vpack.c.bf16 %v461, %v460
        %v487 = vpack.c.bf16 %v463, %v462
        %v488 = vpack.c.bf16 %v465, %v464
        %v489 = vpack.c.bf16 %v467, %v466
        %v490 = vpack.c.bf16 %v469, %v468
        %v491 = vpack.c.bf16 %v471, %v470
        %v492 = vpack.c.bf16 %v473, %v472
        %v493 = vpack.c.bf16 %v475, %v474
        %v494 = vpack.c.bf16 %v477, %v476
        %v495 = vpack.c.bf16 %v479, %v478
        %496 = vst [vmem:[%s151] sm:$0xff] %v480
        %497 = vst [vmem:[%s151 + $0x8] sm:$0xff] %v481
        %498 = vst [vmem:[%s151 + $0x10] sm:$0xff] %v482
        %499 = vst [vmem:[%s151 + $0x18] sm:$0xff] %v483
        %500 = vst [vmem:[%s151 + $0x20] sm:$0xff] %v484
        %501 = vst [vmem:[%s151 + $0x28] sm:$0xff] %v485
        %502 = vst [vmem:[%s151 + $0x30] sm:$0xff] %v486
        %503 = vst [vmem:[%s151 + $0x38] sm:$0xff] %v487
        %504 = vst [vmem:[%s151 + $0x40] sm:$0xff] %v488
        %505 = vst [vmem:[%s151 + $0x48] sm:$0xff] %v489
        %506 = vst [vmem:[%s151 + $0x50] sm:$0xff] %v490
        %507 = vst [vmem:[%s151 + $0x58] sm:$0xff] %v491
        %508 = vst [vmem:[%s151 + $0x60] sm:$0xff] %v492
        %509 = vst [vmem:[%s151 + $0x68] sm:$0xff] %v493
        %510 = vst [vmem:[%s151 + $0x70] sm:$0xff] %v494
        %511 = vst [vmem:[%s151 + $0x78] sm:$0xff] %v495
        %s512 = sand.u32 %s85, 1
        %s513 = scalar_lea.sflag [#allocation3], %s512
        %s514 = sand.u32 %s85, 1
        %s515 = smul.addr %s514, 128
        %s516 = scalar_lea.vmem [#allocation2], %s515
        // Predicated region
        $region29: #{tpu_custom_call.1} parent=27 // pred_check
          %p517 = pneg %p95
        $region30: #{tpu_custom_call.1} parent=27 // pred_check_branch
          %519 = sbr.rel (%p517) target = $region32
        $region31: #{tpu_custom_call.1} parent=27 // pred_region
          %s520 = smul.u32 16, %s20
          %s521 = smul.u32 2, %s21
          %523 = vsyncadd %s513, 0
          %s524 = smul.addr %s520, 2
          %s525 = sadd.s32 %s521, %s524
          %s526 = smul.addr %s525, 4
          %s527 = scalar_lea.hbm %s2, %s526
          %s528 = sshll.u32 %s516, 4
          %s529 = int_to_ptr.vmem [resolvable:$true] %s528
          %s530 = sshll.u32 %s527, 4
          %s531 = int_to_ptr.hbm [resolvable:$true] %s530
          %536 = dma.vmem_to_hbm [thread:$0]  %s529, 2048, %s531, %s513, 128, 128, 8
        $region32: #{tpu_custom_call.1} parent=27 // pred_fallthru
          _
      $region28: #{tpu_custom_call.1} parent=5 // pred_fallthru
        _
      %p537 = scmp.le.s32.totalorder 2, %s11
      // Predicated region
      $region33: #{tpu_custom_call.1} parent=5 // pred_check
        %p538 = pneg %p537
      $region34: #{tpu_custom_call.1} parent=5 // pred_check_branch
        %540 = sbr.rel (%p538) target = $region36
      $region35: #{tpu_custom_call.1} parent=5 // pred_region
        %s541 = ssub.s32 %s11, 2
        // Predicated region
        $region37: #{tpu_custom_call.1} parent=35 // pred_check
          %p542 = pneg %p101
        $region38: #{tpu_custom_call.1} parent=35 // pred_check_branch
          %544 = sbr.rel (%p542) target = $region40
        $region39: #{tpu_custom_call.1} parent=35 // pred_region
          %s545 = sand.u32 %s86, 1
          %s546 = scalar_lea.sflag [#allocation3], %s545
          %s547 = sand.u32 %s86, 1
          %s548 = smul.addr %s547, 128
          %s549 = scalar_lea.vmem [#allocation2], %s548
          %551 = dma.done %s546, 2048
        $region40: #{tpu_custom_call.1} parent=35 // pred_fallthru
          _
      $region36: #{tpu_custom_call.1} parent=5 // pred_fallthru
        _
    $region6: #{tpu_custom_call.1} parent=1 // loop_footer
      %s15 = sadd.s32 1, %s11
    $region7: #{tpu_custom_call.1} parent=1 // loop_footer_branch
      %10 = sbr.rel target = $region3
    $region8: #{tpu_custom_call.1} parent=1 // loop_exit
      _
    %552 = vsyncpa [#allocation3], 1
    %s553 = scalar_lea.sflag [#allocation3], 1
    %554 = vsyncpa %s553, 1

</llo_original>
